<compile_context>
chip_gen: v6e
topology: v6e:2x2x1
jax: 0.10.0
libtpu: 0.0.40
codegen_flags: <defaults>
</compile_context>

<pallas_src>
import math
import functools

import jax
import jax.numpy as jnp
from jax.experimental import pallas as pl
from jax.experimental.pallas import tpu as pltpu


VMEM_LIMIT = 64 * 1024 * 1024


def _layernorm(x, w, b, eps=1e-5):
    # x: (R, C) f32, w/b: (1, C) f32  -- f32 statistics
    mu = jnp.mean(x, axis=-1, keepdims=True)
    xc = x - mu
    var = jnp.mean(xc * xc, axis=-1, keepdims=True)
    inv = jax.lax.rsqrt(var + eps)
    return xc * inv * w + b


def _gelu_exact(x):
    # nn.GELU() default: exact erf formulation
    return 0.5 * x * (1.0 + jax.lax.erf(x / jnp.sqrt(2.0).astype(x.dtype)))


# --------------------------------------------------------------------------
# Kernel 1: LN1 + fused QKV projection (row-tiled over B*T).
# --------------------------------------------------------------------------
def ln_qkv_kernel(x_ref, ln_w_ref, ln_b_ref, wqkv_ref, bqkv_ref,
                  q_ref, k_ref, v_ref, *, scale):
    x = x_ref[...]                                           # (tr, C) f32
    C = x.shape[-1]
    h = _layernorm(x, ln_w_ref[...], ln_b_ref[...]).astype(jnp.bfloat16)
    qkv = jnp.dot(h, wqkv_ref[...],
                  preferred_element_type=jnp.float32) + bqkv_ref[...]  # (tr, 3C) f32
    # fold attention scale into q, store activations as bf16
    q_ref[...] = (qkv[:, 0 * C:1 * C] * scale).astype(q_ref.dtype)
    k_ref[...] = qkv[:, 1 * C:2 * C].astype(k_ref.dtype)
    v_ref[...] = qkv[:, 2 * C:3 * C].astype(v_ref.dtype)


# --------------------------------------------------------------------------
# Kernel 2: flash-style causal attention, heads batched, online softmax.
# grid = (B, num_q_tiles, num_kv_tiles); kv axis is the (arbitrary) reduction.
# --------------------------------------------------------------------------
def flash_attn_kernel(q_ref, k_ref, v_ref, o_ref, m_sc, l_sc, acc_sc):
    qi = pl.program_id(1)
    ki = pl.program_id(2)
    tq = q_ref.shape[2]
    tk = k_ref.shape[2]

    @pl.when(ki == 0)
    def _():
        m_sc[...] = jnp.full(m_sc.shape, -jnp.inf, m_sc.dtype)
        l_sc[...] = jnp.zeros_like(l_sc)
        acc_sc[...] = jnp.zeros_like(acc_sc)

    q_start = qi * tq
    k_start = ki * tk

    # Skip KV tiles entirely above the causal diagonal (saves ~2x FLOPs).
    @pl.when(k_start < q_start + tq)
    def _():
        q = q_ref[0]                                         # (H, tq, hd) bf16 (pre-scaled)
        k = k_ref[0]                                         # (H, tk, hd) bf16
        v = v_ref[0]                                         # (H, tk, hd) bf16
        s = jnp.einsum("hqd,hkd->hqk", q, k,
                       preferred_element_type=jnp.float32)   # (H, tq, tk) f32
        row = jax.lax.broadcasted_iota(jnp.int32, (tq, tk), 0) + q_start
        col = jax.lax.broadcasted_iota(jnp.int32, (tq, tk), 1) + k_start
        s = jnp.where(col <= row, s, jnp.float32(-1e30))

        m_prev = m_sc[...]
        m_new = jnp.maximum(m_prev, jnp.max(s, axis=-1, keepdims=True))
        alpha = jnp.exp(m_prev - m_new)
        p = jnp.exp(s - m_new)
        l_sc[...] = alpha * l_sc[...] + jnp.sum(p, axis=-1, keepdims=True)
        acc_sc[...] = alpha * acc_sc[...] + jnp.einsum(
            "hqk,hkd->hqd", p.astype(v.dtype), v,
            preferred_element_type=jnp.float32)
        m_sc[...] = m_new

    @pl.when(ki == pl.num_programs(2) - 1)
    def _():
        inv_l = pl.reciprocal(l_sc[...], approx=True)
        o_ref[0] = (acc_sc[...] * inv_l).astype(o_ref.dtype)


# --------------------------------------------------------------------------
# Kernel 3: attention out-proj + residual + LN2 + MLP (hidden-dim tiled) +
# residual.  grid = (num_row_tiles, num_hidden_tiles).
# --------------------------------------------------------------------------
def attnproj_mlp_kernel(x_ref, y_ref, wproj_ref, bproj_ref, ln2_w_ref, ln2_b_ref,
                        wfc_ref, bfc_ref, wmlp_ref, bmlp_ref, out_ref,
                        x1_sc, h2_sc, acc_sc):
    h_idx = pl.program_id(1)

    @pl.when(h_idx == 0)
    def _():
        # attention output projection + first residual (f32), then LN2
        x1 = (x_ref[...]
              + jnp.dot(y_ref[...], wproj_ref[...],
                        preferred_element_type=jnp.float32)
              + bproj_ref[...])
        x1_sc[...] = x1
        h2_sc[...] = _layernorm(x1, ln2_w_ref[...], ln2_b_ref[...]).astype(jnp.bfloat16)
        acc_sc[...] = jnp.zeros_like(acc_sc)

    # one tile of the 4C hidden dimension; GELU fused per tile
    f = jnp.dot(h2_sc[...], wfc_ref[...],
                preferred_element_type=jnp.float32) + bfc_ref[...]     # (tr, th) f32
    f = _gelu_exact(f).astype(jnp.bfloat16)
    acc_sc[...] += jnp.dot(f, wmlp_ref[...],
                           preferred_element_type=jnp.float32)         # (tr, C) f32

    @pl.when(h_idx == pl.num_programs(1) - 1)
    def _():
        out_ref[...] = x1_sc[...] + acc_sc[...] + bmlp_ref[...]


# --------------------------------------------------------------------------
# Wrapper
# --------------------------------------------------------------------------
def gpt2_block(x, params, *, n_head,
               row_block=256, q_block=256, kv_block=256, hidden_block=512):
    """x: (B, T, C) float32.  params: dict of f32 weights (see init_params)."""
    B, T, C = x.shape
    H = n_head
    hd = C // H
    N = B * T
    C4 = 4 * C

    row_block = min(row_block, N)
    q_block = min(q_block, T)
    kv_block = min(kv_block, T)
    hidden_block = min(hidden_block, C4)
    assert N % row_block == 0, "row_block must divide B*T"
    assert T % q_block == 0 and T % kv_block == 0, "q/kv blocks must divide T"
    assert C4 % hidden_block == 0, "hidden_block must divide 4*C"
    assert hidden_block % 128 == 0 or hidden_block == C4, \
        "hidden_block must be a multiple of 128 (or the full 4*C)"

    # bf16 weights at the pallas_call boundary (f32 biases / LN params).
    wqkv = params["w_qkv"].astype(jnp.bfloat16)
    wattn = params["w_attnproj"].astype(jnp.bfloat16)
    wfc = params["w_fc"].astype(jnp.bfloat16)
    wmlp = params["w_mlpproj"].astype(jnp.bfloat16)

    x2d = x.reshape(N, C)

    # ---- Kernel 1: LN1 + QKV ----
    k1 = functools.partial(ln_qkv_kernel, scale=1.0 / math.sqrt(hd))
    q2d, k2d, v2d = pl.pallas_call(
        k1,
        out_shape=tuple(jax.ShapeDtypeStruct((N, C), jnp.bfloat16) for _ in range(3)),
        grid_spec=pltpu.PrefetchScalarGridSpec(
            num_scalar_prefetch=0,
            grid=(N // row_block,),
            in_specs=[
                pl.BlockSpec((row_block, C), lambda i: (i, 0)),
                pl.BlockSpec((1, C), lambda i: (0, 0)),
                pl.BlockSpec((1, C), lambda i: (0, 0)),
                pl.BlockSpec((C, 3 * C), lambda i: (0, 0)),
                pl.BlockSpec((1, 3 * C), lambda i: (0, 0)),
            ],
            out_specs=tuple(pl.BlockSpec((row_block, C), lambda i: (i, 0))
                            for _ in range(3)),
        ),
        compiler_params=pltpu.CompilerParams(
            dimension_semantics=("parallel",),
            vmem_limit_bytes=VMEM_LIMIT),
    )(x2d, params["ln1_w"], params["ln1_b"], wqkv, params["b_qkv"])

    # (N, C) -> (B, H, T, hd)  (plain XLA reshuffle outside the kernels)
    def split_heads(a):
        return a.reshape(B, T, H, hd).transpose(0, 2, 1, 3)

    qh, kh, vh = split_heads(q2d), split_heads(k2d), split_heads(v2d)

    # ---- Kernel 2: flash causal attention ----
    y = pl.pallas_call(
        flash_attn_kernel,
        out_shape=jax.ShapeDtypeStruct((B, H, T, hd), jnp.bfloat16),
        grid_spec=pltpu.PrefetchScalarGridSpec(
            num_scalar_prefetch=0,
            grid=(B, T // q_block, T // kv_block),
            in_specs=[
                pl.BlockSpec((1, H, q_block, hd), lambda b, qi, ki: (b, 0, qi, 0)),
                pl.BlockSpec((1, H, kv_block, hd), lambda b, qi, ki: (b, 0, ki, 0)),
                pl.BlockSpec((1, H, kv_block, hd), lambda b, qi, ki: (b, 0, ki, 0)),
            ],
            out_specs=pl.BlockSpec((1, H, q_block, hd), lambda b, qi, ki: (b, 0, qi, 0)),
            scratch_shapes=[
                pltpu.VMEM((H, q_block, 1), jnp.float32),   # running max
                pltpu.VMEM((H, q_block, 1), jnp.float32),   # running denom
                pltpu.VMEM((H, q_block, hd), jnp.float32),  # output accumulator
            ],
        ),
        compiler_params=pltpu.CompilerParams(
            dimension_semantics=("parallel", "parallel", "arbitrary"),
            vmem_limit_bytes=VMEM_LIMIT),
    )(qh, kh, vh)

    y2d = y.transpose(0, 2, 1, 3).reshape(N, C)

    # ---- Kernel 3: attn proj + residual + LN2 + MLP + residual ----
    out2d = pl.pallas_call(
        attnproj_mlp_kernel,
        out_shape=jax.ShapeDtypeStruct((N, C), jnp.float32),
        grid_spec=pltpu.PrefetchScalarGridSpec(
            num_scalar_prefetch=0,
            grid=(N // row_block, C4 // hidden_block),
            in_specs=[
                pl.BlockSpec((row_block, C), lambda i, h: (i, 0)),       # x
                pl.BlockSpec((row_block, C), lambda i, h: (i, 0)),       # attn heads out
                pl.BlockSpec((C, C), lambda i, h: (0, 0)),               # w_attnproj
                pl.BlockSpec((1, C), lambda i, h: (0, 0)),               # b_attnproj
                pl.BlockSpec((1, C), lambda i, h: (0, 0)),               # ln2_w
                pl.BlockSpec((1, C), lambda i, h: (0, 0)),               # ln2_b
                pl.BlockSpec((C, hidden_block), lambda i, h: (0, h)),    # w_fc tile
                pl.BlockSpec((1, hidden_block), lambda i, h: (0, h)),    # b_fc tile
                pl.BlockSpec((hidden_block, C), lambda i, h: (h, 0)),    # w_mlpproj tile
                pl.BlockSpec((1, C), lambda i, h: (0, 0)),               # b_mlpproj
            ],
            out_specs=pl.BlockSpec((row_block, C), lambda i, h: (i, 0)),
            scratch_shapes=[
                pltpu.VMEM((row_block, C), jnp.float32),    # x1 (post residual 1)
                pltpu.VMEM((row_block, C), jnp.bfloat16),   # LN2 output
                pltpu.VMEM((row_block, C), jnp.float32),    # MLP proj accumulator
            ],
        ),
        compiler_params=pltpu.CompilerParams(
            dimension_semantics=("parallel", "arbitrary"),
            vmem_limit_bytes=VMEM_LIMIT),
    )(x2d, y2d, wattn, params["b_attnproj"], params["ln2_w"], params["ln2_b"],
      wfc, params["b_fc"], wmlp, params["b_mlpproj"])

    return out2d.reshape(B, T, C)


# --------------------------------------------------------------------------
# Params / reference / test
# --------------------------------------------------------------------------
def init_params(key, C):
    ks = jax.random.split(key, 6)
    scale = 0.02
    return {
        "ln1_w": jnp.ones((1, C), jnp.float32),
        "ln1_b": jnp.zeros((1, C), jnp.float32),
        "w_qkv": scale * jax.random.normal(ks[0], (C, 3 * C), jnp.float32),
        "b_qkv": scale * jax.random.normal(ks[1], (1, 3 * C), jnp.float32),
        "w_attnproj": scale * jax.random.normal(ks[2], (C, C), jnp.float32),
        "b_attnproj": jnp.zeros((1, C), jnp.float32),
        "ln2_w": jnp.ones((1, C), jnp.float32),
        "ln2_b": jnp.zeros((1, C), jnp.float32),
        "w_fc": scale * jax.random.normal(ks[3], (C, 4 * C), jnp.float32),
        "b_fc": scale * jax.random.normal(ks[4], (1, 4 * C), jnp.float32),
        "w_mlpproj": scale * jax.random.normal(ks[5], (4 * C, C), jnp.float32),
        "b_mlpproj": jnp.zeros((1, C), jnp.float32),
    }


def reference_block(x, p, n_head):
    """Pure-JAX f32 reference reproducing the PyTorch forward (dropout=0)."""
    B, T, C = x.shape
    hd = C // n_head

    def ln(v, w, b):
        mu = jnp.mean(v, -1, keepdims=True)
        var = jnp.mean((v - mu) ** 2, -1, keepdims=True)
        return (v - mu) / jnp.sqrt(var + 1e-5) * w + b

    h = ln(x, p["ln1_w"][0], p["ln1_b"][0])
    qkv = h @ p["w_qkv"] + p["b_qkv"][0]
    q, k, v = jnp.split(qkv, 3, axis=-1)
    q = q.reshape(B, T, n_head, hd).transpose(0, 2, 1, 3)
    k = k.reshape(B, T, n_head, hd).transpose(0, 2, 1, 3)
    v = v.reshape(B, T, n_head, hd).transpose(0, 2, 1, 3)
    att = jnp.einsum("bhqd,bhkd->bhqk", q, k) / math.sqrt(hd)
    mask = jnp.tril(jnp.ones((T, T), bool))
    att = jnp.where(mask, att, -jnp.inf)
    att = jax.nn.softmax(att, axis=-1)
    y = jnp.einsum("bhqk,bhkd->bhqd", att, v)
    y = y.transpose(0, 2, 1, 3).reshape(B, T, C)
    y = y @ p["w_attnproj"] + p["b_attnproj"][0]
    x = x + y
    h2 = ln(x, p["ln2_w"][0], p["ln2_b"][0])
    f = h2 @ p["w_fc"] + p["b_fc"][0]
    f = jax.nn.gelu(f, approximate=False)
    m = f @ p["w_mlpproj"] + p["b_mlpproj"][0]
    return x + m


if __name__ == "__main__":
    # Small shapes, but chosen so every tiled axis has >1 tile:
    #   B*T = 64 rows -> 2 row tiles; T = 32 -> 2x2 q/kv tiles; 4C = 256 -> 2 hidden tiles.
    B, T, C, n_head = 2, 32, 64, 4
    key = jax.random.PRNGKey(0)
    kx, kp = jax.random.split(key)
    x = jax.random.normal(kx, (B, T, C), jnp.float32)
    params = init_params(kp, C)

    out = gpt2_block(x, params, n_head=n_head,
                     row_block=32, q_block=16, kv_block=16, hidden_block=128)
    out = jax.block_until_ready(out)

    ref = reference_block(x, params, n_head)
    assert out.shape == (B, T, C)
    err = float(jnp.max(jnp.abs(out - ref)))
    assert jnp.allclose(out, ref, rtol=2e-2, atol=2e-2), f"max abs err = {err}"
    print("KERNEL_OK")
</pallas_src>

<mosaic_0001>
module attributes {stable_mosaic.version = 11 : i64} {
  func.func @ln_qkv_kernel(%arg0: i32, %arg1: memref<32x64xf32, #tpu.memory_space<vmem>>, %arg2: memref<1x64xf32, #tpu.memory_space<vmem>>, %arg3: memref<1x64xf32, #tpu.memory_space<vmem>>, %arg4: memref<64x192xbf16, #tpu.memory_space<vmem>>, %arg5: memref<1x192xf32, #tpu.memory_space<vmem>>, %arg6: memref<32x64xbf16, #tpu.memory_space<vmem>>, %arg7: memref<32x64xbf16, #tpu.memory_space<vmem>>, %arg8: memref<32x64xbf16, #tpu.memory_space<vmem>>) attributes {dimension_semantics = [#tpu.dimension_semantics<parallel>], iteration_bounds = array<i64: 2>, scalar_prefetch = 0 : i64, scratch_operands = 0 : i64, tpu.core_type = #tpu.core_type<tc>, window_params = [{transform_indices = @transform_0, window_bounds = array<i64: 32, 64>}, {pipeline_mode = #tpu.pipeline_mode<synchronous>, transform_indices = @transform_1, window_bounds = array<i64: 1, 64>}, {pipeline_mode = #tpu.pipeline_mode<synchronous>, transform_indices = @transform_2, window_bounds = array<i64: 1, 64>}, {pipeline_mode = #tpu.pipeline_mode<synchronous>, transform_indices = @transform_3, window_bounds = array<i64: 64, 192>}, {pipeline_mode = #tpu.pipeline_mode<synchronous>, transform_indices = @transform_4, window_bounds = array<i64: 1, 192>}, {transform_indices = @transform_5, window_bounds = array<i64: 32, 64>}, {transform_indices = @transform_6, window_bounds = array<i64: 32, 64>}, {transform_indices = @transform_7, window_bounds = array<i64: 32, 64>}]} {
    %c0 = arith.constant 0 : index
    %c0_0 = arith.constant 0 : index
    %0 = vector.load %arg1[%c0, %c0_0] : memref<32x64xf32, #tpu.memory_space<vmem>>, vector<32x64xf32>
    %c0_1 = arith.constant 0 : index
    %c0_2 = arith.constant 0 : index
    %1 = vector.load %arg2[%c0_1, %c0_2] : memref<1x64xf32, #tpu.memory_space<vmem>>, vector<1x64xf32>
    %c0_3 = arith.constant 0 : index
    %c0_4 = arith.constant 0 : index
    %2 = vector.load %arg3[%c0_3, %c0_4] : memref<1x64xf32, #tpu.memory_space<vmem>>, vector<1x64xf32>
    %cst = arith.constant dense<0.000000e+00> : vector<32xf32>
    %3 = vector.multi_reduction <add>, %0, %cst [1] : vector<32x64xf32> to vector<32xf32>
    %4 = vector.shape_cast %3 : vector<32xf32> to vector<32x1xf32>
    %cst_5 = arith.constant 6.400000e+01 : f32
    %5 = vector.broadcast %cst_5 : f32 to vector<32x1xf32>
    %6 = arith.divf %4, %5 : vector<32x1xf32>
    %7 = vector.broadcast %6 : vector<32x1xf32> to vector<32x64xf32>
    %8 = arith.subf %0, %7 : vector<32x64xf32>
    %9 = arith.mulf %8, %8 : vector<32x64xf32>
    %cst_6 = arith.constant dense<0.000000e+00> : vector<32xf32>
    %10 = vector.multi_reduction <add>, %9, %cst_6 [1] : vector<32x64xf32> to vector<32xf32>
    %11 = vector.shape_cast %10 : vector<32xf32> to vector<32x1xf32>
    %cst_7 = arith.constant 6.400000e+01 : f32
    %12 = vector.broadcast %cst_7 : f32 to vector<32x1xf32>
    %13 = arith.divf %11, %12 : vector<32x1xf32>
    %cst_8 = arith.constant 9.99999974E-6 : f32
    %14 = vector.broadcast %cst_8 : f32 to vector<32x1xf32>
    %15 = arith.addf %13, %14 : vector<32x1xf32>
    %16 = math.rsqrt %15 : vector<32x1xf32>
    %17 = vector.broadcast %16 : vector<32x1xf32> to vector<32x64xf32>
    %18 = arith.mulf %8, %17 : vector<32x64xf32>
    %19 = vector.broadcast %1 : vector<1x64xf32> to vector<32x64xf32>
    %20 = arith.mulf %18, %19 : vector<32x64xf32>
    %21 = vector.broadcast %2 : vector<1x64xf32> to vector<32x64xf32>
    %22 = arith.addf %20, %21 : vector<32x64xf32>
    %23 = arith.truncf %22 : vector<32x64xf32> to vector<32x64xbf16>
    %c0_9 = arith.constant 0 : index
    %c0_10 = arith.constant 0 : index
    %24 = vector.load %arg4[%c0_9, %c0_10] : memref<64x192xbf16, #tpu.memory_space<vmem>>, vector<64x192xbf16>
    %cst_11 = arith.constant dense<0.000000e+00> : vector<32x192xf32>
    %25 = tpu.matmul %23, %24, %cst_11 {dimension_numbers = #tpu.dot_dimension_numbers<[1], [0], [0], [1], [0, 0, 1, 1], [], []>} : vector<32x64xbf16>, vector<64x192xbf16>, vector<32x192xf32> -> vector<32x192xf32>
    %c0_12 = arith.constant 0 : index
    %c0_13 = arith.constant 0 : index
    %26 = vector.load %arg5[%c0_12, %c0_13] : memref<1x192xf32, #tpu.memory_space<vmem>>, vector<1x192xf32>
    %27 = vector.broadcast %26 : vector<1x192xf32> to vector<32x192xf32>
    %28 = arith.addf %25, %27 : vector<32x192xf32>
    %29 = vector.extract_strided_slice %28 {offsets = [0, 0], sizes = [32, 64], strides = [1, 1]} : vector<32x192xf32> to vector<32x64xf32>
    %cst_14 = arith.constant 2.500000e-01 : f32
    %30 = vector.broadcast %cst_14 : f32 to vector<32x64xf32>
    %31 = arith.mulf %29, %30 : vector<32x64xf32>
    %32 = arith.truncf %31 : vector<32x64xf32> to vector<32x64xbf16>
    %c0_15 = arith.constant 0 : index
    %c0_16 = arith.constant 0 : index
    %33 = vector.load %arg6[%c0_15, %c0_16] : memref<32x64xbf16, #tpu.memory_space<vmem>>, vector<32x64xbf16>
    tpu.vector_store %arg6[%c0_15, %c0_16], %32 {strides = array<i32>} : memref<32x64xbf16, #tpu.memory_space<vmem>>, vector<32x64xbf16>,
    %34 = vector.extract_strided_slice %28 {offsets = [0, 64], sizes = [32, 64], strides = [1, 1]} : vector<32x192xf32> to vector<32x64xf32>
    %35 = arith.truncf %34 : vector<32x64xf32> to vector<32x64xbf16>
    %c0_17 = arith.constant 0 : index
    %c0_18 = arith.constant 0 : index
    %36 = vector.load %arg7[%c0_17, %c0_18] : memref<32x64xbf16, #tpu.memory_space<vmem>>, vector<32x64xbf16>
    tpu.vector_store %arg7[%c0_17, %c0_18], %35 {strides = array<i32>} : memref<32x64xbf16, #tpu.memory_space<vmem>>, vector<32x64xbf16>,
    %37 = vector.extract_strided_slice %28 {offsets = [0, 128], sizes = [32, 64], strides = [1, 1]} : vector<32x192xf32> to vector<32x64xf32>
    %38 = arith.truncf %37 : vector<32x64xf32> to vector<32x64xbf16>
    %c0_19 = arith.constant 0 : index
    %c0_20 = arith.constant 0 : index
    %39 = vector.load %arg8[%c0_19, %c0_20] : memref<32x64xbf16, #tpu.memory_space<vmem>>, vector<32x64xbf16>
    tpu.vector_store %arg8[%c0_19, %c0_20], %38 {strides = array<i32>} : memref<32x64xbf16, #tpu.memory_space<vmem>>, vector<32x64xbf16>,
    return
  }
  func.func @transform_0(%arg0: i32) -> (i32, i32) {
    %c0_i32 = arith.constant 0 : i32
    %c0_i32_0 = arith.constant 0 : i32
    return %arg0, %c0_i32 : i32, i32
  }
  func.func @transform_1(%arg0: i32) -> (i32, i32) {
    %c0_i32 = arith.constant 0 : i32
    %c0_i32_0 = arith.constant 0 : i32
    %c0_i32_1 = arith.constant 0 : i32
    return %c0_i32, %c0_i32_0 : i32, i32
  }
  func.func @transform_2(%arg0: i32) -> (i32, i32) {
    %c0_i32 = arith.constant 0 : i32
    %c0_i32_0 = arith.constant 0 : i32
    %c0_i32_1 = arith.constant 0 : i32
    return %c0_i32, %c0_i32_0 : i32, i32
  }
  func.func @transform_3(%arg0: i32) -> (i32, i32) {
    %c0_i32 = arith.constant 0 : i32
    %c0_i32_0 = arith.constant 0 : i32
    %c0_i32_1 = arith.constant 0 : i32
    return %c0_i32, %c0_i32_0 : i32, i32
  }
  func.func @transform_4(%arg0: i32) -> (i32, i32) {
    %c0_i32 = arith.constant 0 : i32
    %c0_i32_0 = arith.constant 0 : i32
    %c0_i32_1 = arith.constant 0 : i32
    return %c0_i32, %c0_i32_0 : i32, i32
  }
  func.func @transform_5(%arg0: i32) -> (i32, i32) {
    %c0_i32 = arith.constant 0 : i32
    %c0_i32_0 = arith.constant 0 : i32
    return %arg0, %c0_i32 : i32, i32
  }
  func.func @transform_6(%arg0: i32) -> (i32, i32) {
    %c0_i32 = arith.constant 0 : i32
    %c0_i32_0 = arith.constant 0 : i32
    return %arg0, %c0_i32 : i32, i32
  }
  func.func @transform_7(%arg0: i32) -> (i32, i32) {
    %c0_i32 = arith.constant 0 : i32
    %c0_i32_0 = arith.constant 0 : i32
    return %arg0, %c0_i32 : i32, i32
  }
}

</mosaic_0001>

<llo_original>
// kernel: tpu_custom_call.1
$region0: #{tpu_custom_call.1}
  #allocation0 [shape = 'u32[]', space=smem, size = 0x4, offset = 0x4, fixed_abs, tag = 'smem constant byte address 0x4 - core index']
  #allocation1 [shape = 'u32[144,128]{1,0:T(1,128)}', space=vmem, size = 0x12000, scoped, tag = 'internal scratch']
  %s0 = inlined_call_operand.hbm [shape: f32[64,64], index: 0, kind: input, shape index: {}]
  %s1 = inlined_call_operand.vmem [shape: f32[1,64], index: 1, kind: input, shape index: {}]
  %s2 = inlined_call_operand.hbm [shape: f32[1,64], index: 2, kind: input, shape index: {}]
  %s3 = inlined_call_operand.hbm [shape: bf16[64,192], index: 3, kind: input, shape index: {}]
  %s4 = inlined_call_operand.vmem [shape: f32[1,192], index: 4, kind: input, shape index: {}]
  %s5 = inlined_call_operand.hbm [shape: bf16[64,64], index: 5, kind: output, shape index: {0}]
  %s6 = inlined_call_operand.hbm [shape: bf16[64,64], index: 6, kind: output, shape index: {1}]
  %s7 = inlined_call_operand.hbm [shape: bf16[64,64], index: 7, kind: output, shape index: {2}]
  %8 = xla_tuple %s5, %s6, %s7
  %s9 = sld [smem:[#allocation0]]
  $region81: #{tpu_custom_call.1} parent=0
    _
  %s11 = ssub.s32 1, %s9
  %s12 = scalar_select 0, %s11, %s9
  $region1: #{tpu_custom_call.1} parent=0
    #allocation2 [shape = 'u8[32768]{0}', space=vmem, size = 0x8000, scoped, tag = 'input window, operand 0']
    #allocation3 [shape = 's32[2]{0}', space=sflag, size = 0x8, scoped, tag = 'scoped memory for tpu_custom_call.1']
    #allocation4 [shape = 's32[2]{0}', space=sflag, size = 0x8, scoped, tag = 'scoped memory for tpu_custom_call.1']
    #allocation5 [shape = 'u8[512]{0}', space=vmem, size = 0x400, scoped, tag = 'input window, operand 2, single buffered']
    #allocation6 [shape = 's32[1]{0}', space=sflag, size = 0x4, scoped, tag = 'scoped memory for tpu_custom_call.1']
    #allocation7 [shape = 'u8[32768]{0}', space=vmem, size = 0x8000, scoped, tag = 'input window, operand 3, single buffered']
    #allocation8 [shape = 'u8[16384]{0}', space=vmem, size = 0x4000, scoped, tag = 'output window, operand 0']
    #allocation9 [shape = 'u8[16384]{0}', space=vmem, size = 0x4000, scoped, tag = 'output window, operand 1']
    #allocation10 [shape = 's32[2]{0}', space=sflag, size = 0x8, scoped, tag = 'scoped memory for tpu_custom_call.1']
    #allocation11 [shape = 'u8[16384]{0}', space=vmem, size = 0x4000, scoped, tag = 'output window, operand 2']
    %13 = vsyncpa [#allocation3], 0
    %s14 = scalar_lea.sflag [#allocation3], 1
    %15 = vsyncpa %s14, 0
    %16 = vsyncpa [#allocation6], 0
    %17 = vsyncpa [#allocation4], 0
    %s18 = scalar_lea.sflag [#allocation4], 1
    %19 = vsyncpa %s18, 0
    %20 = vsyncpa [#allocation10], 0
    %s21 = scalar_lea.sflag [#allocation10], 1
    %22 = vsyncpa %s21, 0
    loop: start=0, step=1, limit=4
    $region2: #{tpu_custom_call.1} parent=1 // loop_pre_header
      _
    $region3: #{tpu_custom_call.1} parent=1 // loop_header
      %s24 = sphi 0, %s28
      %p25 = scmp.ge.s32.totalorder %s24, 4
      %s34 = sphi 0, %s36
      %s37 = sphi 0, %s34
      %s38 = sphi 0, %s37
      %s54 = sphi 0, %s38
      %s58 = sphi 0, %s58
      %s60 = sphi 0, %s58
      %s61 = sphi 0, %s60
      %s75 = sphi 0, %s61
      %s79 = sphi 0, %s79
      %s81 = sphi 0, %s79
      %s82 = sphi 0, %s81
      %s96 = sphi 0, %s82
      %s100 = sphi 0, %s100
      %s102 = sphi 0, %s100
      %s103 = sphi 0, %s102
      %s117 = sphi 0, %s103
      %s121 = sphi 0, %s121
      %s123 = sphi 0, %s121
      %s124 = sphi 0, %s123
      %s138 = sphi 0, %s124
      %s144 = sphi 0, %s146
      %s147 = sphi 0, %s144
      %s148 = sphi 0, %s147
      %s164 = sphi 0, %s148
      %s170 = sphi 0, %s172
      %s173 = sphi 0, %s170
      %s174 = sphi 0, %s173
      %s190 = sphi 0, %s174
      %s196 = sphi 0, %s198
      %s199 = sphi 0, %s196
      %s200 = sphi 0, %s199
      %s216 = sphi 0, %s200
    $region4: #{tpu_custom_call.1} parent=1 // loop_header_branch
      %27 = sbr.rel (%p25) target = $region8
    $region5: #{tpu_custom_call.1} parent=1 // loop_body
      %s29 = ssub.s32 %s24, 1
      %s30 = ssub.s32 %s24, 2
      %s31 = sadd.s32 %s24, 1
      %s32 = ssub.s32 %s24, %s31
      %p33 = scmp.eq.s32.totalorder %s32, 0
      %s35 = sadd.s32 %s34, 1
      %s36 = scalar_select %p33, %s34, %s35
      %p39 = pneg %p33
      %p40 = scmp.eq.s32.totalorder %s24, 1
      %p41 = por %p39, %p40
      %p42 = scmp.ne.s32.totalorder %s34, %s37
      %p43 = scmp.eq.s32.totalorder %s24, 0
      %p44 = por %p42, %p43
      %p45 = scmp.ne.s32.totalorder %s34, %s37
      %p46 = scmp.eq.s32.totalorder %s29, 1
      %p47 = por %p45, %p46
      %p48 = scmp.ne.s32.totalorder %s37, %s38
      %p49 = scmp.eq.s32.totalorder %s29, 0
      %p50 = por %p48, %p49
      %p51 = scmp.ne.s32.totalorder %s37, %s38
      %p52 = scmp.eq.s32.totalorder %s30, 1
      %p53 = por %p51, %p52
      %p55 = scmp.ne.s32.totalorder %s38, %s54
      %p56 = scmp.eq.s32.totalorder %s30, 0
      %p57 = por %p55, %p56
      %s59 = sadd.s32 %s58, 1
      %p62 = scmp.eq.s32.totalorder %s24, 1
      %p63 = scmp.ne.s32.totalorder %s58, %s60
      %p64 = scmp.eq.s32.totalorder %s24, 0
      %p65 = por %p63, %p64
      %p66 = scmp.ne.s32.totalorder %s58, %s60
      %p67 = scmp.eq.s32.totalorder %s29, 1
      %p68 = por %p66, %p67
      %p69 = scmp.ne.s32.totalorder %s60, %s61
      %p70 = scmp.eq.s32.totalorder %s29, 0
      %p71 = por %p69, %p70
      %p72 = scmp.ne.s32.totalorder %s60, %s61
      %p73 = scmp.eq.s32.totalorder %s30, 1
      %p74 = por %p72, %p73
      %p76 = scmp.ne.s32.totalorder %s61, %s75
      %p77 = scmp.eq.s32.totalorder %s30, 0
      %p78 = por %p76, %p77
      %s80 = sadd.s32 %s79, 1
      %p83 = scmp.eq.s32.totalorder %s24, 1
      %p84 = scmp.ne.s32.totalorder %s79, %s81
      %p85 = scmp.eq.s32.totalorder %s24, 0
      %p86 = por %p84, %p85
      %p87 = scmp.ne.s32.totalorder %s79, %s81
      %p88 = scmp.eq.s32.totalorder %s29, 1
      %p89 = por %p87, %p88
      %p90 = scmp.ne.s32.totalorder %s81, %s82
      %p91 = scmp.eq.s32.totalorder %s29, 0
      %p92 = por %p90, %p91
      %p93 = scmp.ne.s32.totalorder %s81, %s82
      %p94 = scmp.eq.s32.totalorder %s30, 1
      %p95 = por %p93, %p94
      %p97 = scmp.ne.s32.totalorder %s82, %s96
      %p98 = scmp.eq.s32.totalorder %s30, 0
      %p99 = por %p97, %p98
      %s101 = sadd.s32 %s100, 1
      %p104 = scmp.eq.s32.totalorder %s24, 1
      %p105 = scmp.ne.s32.totalorder %s100, %s102
      %p106 = scmp.eq.s32.totalorder %s24, 0
      %p107 = por %p105, %p106
      %p108 = scmp.ne.s32.totalorder %s100, %s102
      %p109 = scmp.eq.s32.totalorder %s29, 1
      %p110 = por %p108, %p109
      %p111 = scmp.ne.s32.totalorder %s102, %s103
      %p112 = scmp.eq.s32.totalorder %s29, 0
      %p113 = por %p111, %p112
      %p114 = scmp.ne.s32.totalorder %s102, %s103
      %p115 = scmp.eq.s32.totalorder %s30, 1
      %p116 = por %p114, %p115
      %p118 = scmp.ne.s32.totalorder %s103, %s117
      %p119 = scmp.eq.s32.totalorder %s30, 0
      %p120 = por %p118, %p119
      %s122 = sadd.s32 %s121, 1
      %p125 = scmp.eq.s32.totalorder %s24, 1
      %p126 = scmp.ne.s32.totalorder %s121, %s123
      %p127 = scmp.eq.s32.totalorder %s24, 0
      %p128 = por %p126, %p127
      %p129 = scmp.ne.s32.totalorder %s121, %s123
      %p130 = scmp.eq.s32.totalorder %s29, 1
      %p131 = por %p129, %p130
      %p132 = scmp.ne.s32.totalorder %s123, %s124
      %p133 = scmp.eq.s32.totalorder %s29, 0
      %p134 = por %p132, %p133
      %p135 = scmp.ne.s32.totalorder %s123, %s124
      %p136 = scmp.eq.s32.totalorder %s30, 1
      %p137 = por %p135, %p136
      %p139 = scmp.ne.s32.totalorder %s124, %s138
      %p140 = scmp.eq.s32.totalorder %s30, 0
      %p141 = por %p139, %p140
      %s142 = ssub.s32 %s24, %s31
      %p143 = scmp.eq.s32.totalorder %s142, 0
      %s145 = sadd.s32 %s144, 1
      %s146 = scalar_select %p143, %s144, %s145
      %p149 = pneg %p143
      %p150 = scmp.eq.s32.totalorder %s24, 1
      %p151 = por %p149, %p150
      %p152 = scmp.ne.s32.totalorder %s144, %s147
      %p153 = scmp.eq.s32.totalorder %s24, 0
      %p154 = por %p152, %p153
      %p155 = scmp.ne.s32.totalorder %s144, %s147
      %p156 = scmp.eq.s32.totalorder %s29, 1
      %p157 = por %p155, %p156
      %p158 = scmp.ne.s32.totalorder %s147, %s148
      %p159 = scmp.eq.s32.totalorder %s29, 0
      %p160 = por %p158, %p159
      %p161 = scmp.ne.s32.totalorder %s147, %s148
      %p162 = scmp.eq.s32.totalorder %s30, 1
      %p163 = por %p161, %p162
      %p165 = scmp.ne.s32.totalorder %s148, %s164
      %p166 = scmp.eq.s32.totalorder %s30, 0
      %p167 = por %p165, %p166
      %s168 = ssub.s32 %s24, %s31
      %p169 = scmp.eq.s32.totalorder %s168, 0
      %s171 = sadd.s32 %s170, 1
      %s172 = scalar_select %p169, %s170, %s171
      %p175 = pneg %p169
      %p176 = scmp.eq.s32.totalorder %s24, 1
      %p177 = por %p175, %p176
      %p178 = scmp.ne.s32.totalorder %s170, %s173
      %p179 = scmp.eq.s32.totalorder %s24, 0
      %p180 = por %p178, %p179
      %p181 = scmp.ne.s32.totalorder %s170, %s173
      %p182 = scmp.eq.s32.totalorder %s29, 1
      %p183 = por %p181, %p182
      %p184 = scmp.ne.s32.totalorder %s173, %s174
      %p185 = scmp.eq.s32.totalorder %s29, 0
      %p186 = por %p184, %p185
      %p187 = scmp.ne.s32.totalorder %s173, %s174
      %p188 = scmp.eq.s32.totalorder %s30, 1
      %p189 = por %p187, %p188
      %p191 = scmp.ne.s32.totalorder %s174, %s190
      %p192 = scmp.eq.s32.totalorder %s30, 0
      %p193 = por %p191, %p192
      %s194 = ssub.s32 %s24, %s31
      %p195 = scmp.eq.s32.totalorder %s194, 0
      %s197 = sadd.s32 %s196, 1
      %s198 = scalar_select %p195, %s196, %s197
      %p201 = pneg %p195
      %p202 = scmp.eq.s32.totalorder %s24, 1
      %p203 = por %p201, %p202
      %p204 = scmp.ne.s32.totalorder %s196, %s199
      %p205 = scmp.eq.s32.totalorder %s24, 0
      %p206 = por %p204, %p205
      %p207 = scmp.ne.s32.totalorder %s196, %s199
      %p208 = scmp.eq.s32.totalorder %s29, 1
      %p209 = por %p207, %p208
      %p210 = scmp.ne.s32.totalorder %s199, %s200
      %p211 = scmp.eq.s32.totalorder %s29, 0
      %p212 = por %p210, %p211
      %p213 = scmp.ne.s32.totalorder %s199, %s200
      %p214 = scmp.eq.s32.totalorder %s30, 1
      %p215 = por %p213, %p214
      %p217 = scmp.ne.s32.totalorder %s200, %s216
      %p218 = scmp.eq.s32.totalorder %s30, 0
      %p219 = por %p217, %p218
      %p220 = scmp.le.s32.totalorder 1, %s24
      %p221 = scmp.lt.s32.totalorder %s24, 3
      %p222 = pnand %p220, %p221
      %p223 = pneg %p222
      // Predicated region
      $region9: #{tpu_custom_call.1} parent=5 // pred_check
        _
      $region10: #{tpu_custom_call.1} parent=5 // pred_check_branch
        %225 = sbr.rel (%p222) target = $region12
      $region11: #{tpu_custom_call.1} parent=5 // pred_region
        %s226 = ssub.s32 %s24, 1
        // Predicated region
        $region13: #{tpu_custom_call.1} parent=11 // pred_check
          %p227 = pneg %p71
        $region14: #{tpu_custom_call.1} parent=11 // pred_check_branch
          %229 = sbr.rel (%p227) target = $region16
        $region15: #{tpu_custom_call.1} parent=11 // pred_region
          _
        $region16: #{tpu_custom_call.1} parent=11 // pred_fallthru
          _
        // Predicated region
        $region17: #{tpu_custom_call.1} parent=11 // pred_check
          %p230 = pneg %p92
        $region18: #{tpu_custom_call.1} parent=11 // pred_check_branch
          %232 = sbr.rel (%p230) target = $region20
        $region19: #{tpu_custom_call.1} parent=11 // pred_region
          %s234 = ssub.s32 16, 16
          %235 = vsyncadd [#allocation6], %s234
          %s237 = sshll.u32 [#allocation5], 4
          %s238 = int_to_ptr.vmem [resolvable:$true] %s237
          %240 = dma.hbm_to_vmem [thread:$0]  %s2, 16, %s238, [#allocation6]
        $region20: #{tpu_custom_call.1} parent=11 // pred_fallthru
          _
        // Predicated region
        $region21: #{tpu_custom_call.1} parent=11 // pred_check
          %p241 = pneg %p113
        $region22: #{tpu_custom_call.1} parent=11 // pred_check_branch
          %243 = sbr.rel (%p241) target = $region24
        $region23: #{tpu_custom_call.1} parent=11 // pred_region
          %s245 = ssub.s32 1024, 1024
          %246 = vsyncadd [#allocation6], %s245
          %s247 = sshll.u32 [#allocation7], 4
          %s248 = int_to_ptr.vmem [resolvable:$true] %s247
          %253 = dma.hbm_to_vmem [thread:$0]  %s3, 1024, %s248, [#allocation6], 128, 128, 8
        $region24: #{tpu_custom_call.1} parent=11 // pred_fallthru
          _
        // Predicated region
        $region25: #{tpu_custom_call.1} parent=11 // pred_check
          %p254 = pneg %p134
        $region26: #{tpu_custom_call.1} parent=11 // pred_check_branch
          %256 = sbr.rel (%p254) target = $region28
        $region27: #{tpu_custom_call.1} parent=11 // pred_region
          _
        $region28: #{tpu_custom_call.1} parent=11 // pred_fallthru
          _
      $region12: #{tpu_custom_call.1} parent=5 // pred_fallthru
        _
      %p257 = scmp.lt.s32.totalorder %s24, 2
      // Predicated region
      $region29: #{tpu_custom_call.1} parent=5 // pred_check
        %p258 = pneg %p257
      $region30: #{tpu_custom_call.1} parent=5 // pred_check_branch
        %260 = sbr.rel (%p258) target = $region32
      $region31: #{tpu_custom_call.1} parent=5 // pred_region
        // Predicated region
        $region33: #{tpu_custom_call.1} parent=31 // pred_check
          %p261 = pneg %p44
        $region34: #{tpu_custom_call.1} parent=31 // pred_check_branch
          %263 = sbr.rel (%p261) target = $region36
        $region35: #{tpu_custom_call.1} parent=31 // pred_region
          %s264 = sand.u32 %s34, 1
          %s265 = scalar_lea.sflag [#allocation3], %s264
          %s266 = sand.u32 %s34, 1
          %s267 = smul.addr %s266, 32
          %s268 = scalar_lea.vmem [#allocation2], %s267
          %s269 = smul.u32 4, %s24
          %s271 = ssub.s32 512, 512
          %272 = vsyncadd %s265, %s271
          %s273 = smul.addr %s269, 128
          %s274 = scalar_lea.hbm %s0, %s273
          %s275 = sshll.u32 %s268, 4
          %s276 = int_to_ptr.vmem [resolvable:$true] %s275
          %281 = dma.hbm_to_vmem [thread:$0]  %s274, 512, %s276, %s265, 128, 128, 8
        $region36: #{tpu_custom_call.1} parent=31 // pred_fallthru
          _
      $region32: #{tpu_custom_call.1} parent=5 // pred_fallthru
        _
      %p282 = scmp.le.s32.totalorder 1, %s24
      %p283 = scmp.lt.s32.totalorder %s24, 3
      %p284 = pnand %p282, %p283
      %p285 = pneg %p284
      // Predicated region
      $region37: #{tpu_custom_call.1} parent=5 // pred_check
        _
      $region38: #{tpu_custom_call.1} parent=5 // pred_check_branch
        %287 = sbr.rel (%p284) target = $region40
      $region39: #{tpu_custom_call.1} parent=5 // pred_region
        %s288 = ssub.s32 %s24, 1
        %s289 = sand.u32 %s37, 1
        %s290 = scalar_lea.sflag [#allocation3], %s289
        %s291 = sand.u32 %s37, 1
        %s292 = smul.addr %s291, 32
        %s293 = scalar_lea.vmem [#allocation2], %s292
        // Predicated region
        $region41: #{tpu_custom_call.1} parent=39 // pred_check
          %p294 = pneg %p50
        $region42: #{tpu_custom_call.1} parent=39 // pred_check_branch
          %296 = sbr.rel (%p294) target = $region44
        $region43: #{tpu_custom_call.1} parent=39 // pred_region
          %297 = dma.done %s290, 512
        $region44: #{tpu_custom_call.1} parent=39 // pred_fallthru
          _
        // Predicated region
        $region45: #{tpu_custom_call.1} parent=39 // pred_check
          %p298 = pneg %p92
        $region46: #{tpu_custom_call.1} parent=39 // pred_check_branch
          %300 = sbr.rel (%p298) target = $region48
        $region47: #{tpu_custom_call.1} parent=39 // pred_region
          %301 = dma.done [#allocation6], 16
        $region48: #{tpu_custom_call.1} parent=39 // pred_fallthru
          _
        // Predicated region
        $region49: #{tpu_custom_call.1} parent=39 // pred_check
          %p302 = pneg %p113
        $region50: #{tpu_custom_call.1} parent=39 // pred_check_branch
          %304 = sbr.rel (%p302) target = $region52
        $region51: #{tpu_custom_call.1} parent=39 // pred_region
          %305 = dma.done [#allocation6], 1024
        $region52: #{tpu_custom_call.1} parent=39 // pred_fallthru
          _
        %s306 = sand.u32 %s37, 1
        %s307 = scalar_lea.sflag [#allocation3], %s306
        %s308 = sand.u32 %s37, 1
        %s309 = smul.addr %s308, 32
        %s310 = scalar_lea.vmem [#allocation2], %s309
        %p311 = pneg %p50
        %p312 = pneg %p47
        %p313 = pneg %p71
        %p314 = pneg %p68
        %p315 = pneg %p92
        %p316 = pneg %p89
        %p317 = pneg %p113
        %p318 = pneg %p110
        %p319 = pneg %p134
        %p320 = pneg %p131
        %p321 = pneg %p160
        %p322 = pneg %p157
        %s323 = sand.u32 %s147, 1
        %s324 = scalar_lea.sflag [#allocation4], %s323
        %s325 = sand.u32 %s147, 1
        %s326 = smul.addr %s325, 16
        %s327 = scalar_lea.vmem [#allocation8], %s326
        %p328 = pneg %p186
        %p329 = pneg %p183
        %s330 = sand.u32 %s29, 1
        %s331 = scalar_lea.sflag [#allocation10], %s330
        %s332 = sand.u32 %s173, 1
        %s333 = smul.addr %s332, 16
        %s334 = scalar_lea.vmem [#allocation9], %s333
        %p335 = pneg %p212
        %p336 = pneg %p209
        %s337 = sand.u32 %s29, 1
        %s338 = scalar_lea.sflag [#allocation10], %s337
        %s339 = sand.u32 %s199, 1
        %s340 = smul.addr %s339, 16
        %s341 = scalar_lea.vmem [#allocation11], %s340
        %s342 = smul.u32 4, %s29
        %s343 = smul.u32 4, %s29
        %s344 = smul.u32 4, %s29
        %s345 = smul.u32 4, %s29
        %v347 = vld [vmem:[%s293] sm:$0xff]
        %v348 = vld [vmem:[%s293 + $0x8] sm:$0xff]
        %v349 = vld [vmem:[%s293 + $0x10] sm:$0xff]
        %v350 = vld [vmem:[%s293 + $0x18] sm:$0xff]
        %v351 = vld [vmem:[%s1] sm:$0x1]
        %v352 = vld [vmem:[#allocation5] sm:$0x1]
        %vm353 = vcmask 523264
        %v354 = vsel %vm353, %v347, 0.0
        %355 = vadd.xlane.f32.xlu0 %v354
        %v356 = vpop.xlane.xlu0 %355
        %v357 = vsel %vm353, %v348, 0.0
        %358 = vadd.xlane.f32.xlu0 %v357
        %v359 = vpop.xlane.xlu0 %358
        %v360 = vsel %vm353, %v349, 0.0
        %361 = vadd.xlane.f32.xlu0 %v360
        %v362 = vpop.xlane.xlu0 %361
        %v363 = vsel %vm353, %v350, 0.0
        %364 = vadd.xlane.f32.xlu0 %v363
        %v365 = vpop.xlane.xlu0 %364
        %v366 = vrcp.pop 64.0
        %v367 = vmul.f32 %v356, %v366
        %v368 = vmul.f32 %v359, %v366
        %v369 = vmul.f32 %v362, %v366
        %v370 = vmul.f32 %v365, %v366
        %v371 = vsub.f32 %v347, %v367
        %v372 = vsub.f32 %v348, %v368
        %v373 = vsub.f32 %v349, %v369
        %v374 = vsub.f32 %v350, %v370
        %v375 = vmul.f32 %v371, %v371
        %v376 = vmul.f32 %v372, %v372
        %v377 = vmul.f32 %v373, %v373
        %v378 = vmul.f32 %v374, %v374
        %v379 = vsel %vm353, %v375, 0.0
        %380 = vadd.xlane.f32.xlu0 %v379
        %v381 = vpop.xlane.xlu0 %380
        %v382 = vsel %vm353, %v376, 0.0
        %383 = vadd.xlane.f32.xlu0 %v382
        %v384 = vpop.xlane.xlu0 %383
        %v385 = vsel %vm353, %v377, 0.0
        %386 = vadd.xlane.f32.xlu0 %v385
        %v387 = vpop.xlane.xlu0 %386
        %v388 = vsel %vm353, %v378, 0.0
        %389 = vadd.xlane.f32.xlu0 %v388
        %v390 = vpop.xlane.xlu0 %389
        %v391 = vmul.f32 %v381, %v366
        %v392 = vmul.f32 %v384, %v366
        %v393 = vmul.f32 %v387, %v366
        %v394 = vmul.f32 %v390, %v366
        %v395 = vadd.f32 %v391, 1e-05
        %v396 = vadd.f32 %v392, 1e-05
        %v397 = vadd.f32 %v393, 1e-05
        %v398 = vadd.f32 %v394, 1e-05
        %v399 = vrsqrt.pop %v395
        %v400 = vrsqrt.pop %v396
        %v401 = vrsqrt.pop %v397
        %v402 = vrsqrt.pop %v398
        %v403 = vmul.f32 %v371, %v399
        %v404 = vmul.f32 %v372, %v400
        %v405 = vmul.f32 %v373, %v401
        %v406 = vmul.f32 %v374, %v402
        %v408 = vlaneseq
        %v409 = vshrl.u32 %v408, 7
        %v410 = vsub.s32 0, %v409
        %v411 = vrot.slane %v351, %v410
        %v413 = vmul.f32 %v403, %v411
        %v414 = vmul.f32 %v404, %v411
        %v415 = vmul.f32 %v405, %v411
        %v416 = vmul.f32 %v406, %v411
        %v418 = vlaneseq
        %v419 = vshrl.u32 %v418, 7
        %v420 = vsub.s32 0, %v419
        %v421 = vrot.slane %v352, %v420
        %v423 = vadd.f32 %v413, %v421
        %v424 = vadd.f32 %v414, %v421
        %v425 = vadd.f32 %v415, %v421
        %v426 = vadd.f32 %v416, %v421
        %v427 = vpack.c.bf16 %v424, %v423
        %v428 = vpack.c.bf16 %v426, %v425
        %v429 = vld [vmem:[#allocation7] sm:$0xff]
        %v430 = vld [vmem:[#allocation7 + $0x8] sm:$0xff]
        %v431 = vld [vmem:[#allocation7 + $0x10] sm:$0xff]
        %v432 = vld [vmem:[#allocation7 + $0x18] sm:$0xff]
        %v433 = vld [vmem:[#allocation7 + $0x20] sm:$0xff]
        %v434 = vld [vmem:[#allocation7 + $0x28] sm:$0xff]
        %v435 = vld [vmem:[#allocation7 + $0x30] sm:$0xff]
        %v436 = vld [vmem:[#allocation7 + $0x38] sm:$0xff]
        %v437 = vld [vmem:[%s4] sm:$0x3]
        %v439 = vlaneseq
        %v440 = vshrl.u32 %v439, 7
        %v441 = vsub.s32 0, %v440
        %v442 = vrot.slane %v437, %v441
        %v443 = vlaneseq
        %v444 = vshrl.u32 %v443, 7
        %v445 = vsub.s32 1, %v444
        %v446 = vrot.slane %v437, %v445
        %v457 = vunpack.c.l.b16 %v429
        %v458 = vunpack.c.h.b16 %v429
        %v459 = vunpack.c.l.b16 %v430
        %v460 = vunpack.c.h.b16 %v430
        %v461 = vunpack.c.l.b16 %v431
        %v462 = vunpack.c.h.b16 %v431
        %v463 = vunpack.c.l.b16 %v432
        %v464 = vunpack.c.h.b16 %v432
        %v465 = vunpack.c.l.b16 %v433
        %v466 = vunpack.c.h.b16 %v433
        %v467 = vunpack.c.l.b16 %v434
        %v468 = vunpack.c.h.b16 %v434
        %v469 = vunpack.c.l.b16 %v435
        %v470 = vunpack.c.h.b16 %v435
        %v471 = vunpack.c.l.b16 %v436
        %v472 = vunpack.c.h.b16 %v436
        %v473 = vpack.c.b16 %v459, %v457
        %v474 = vpack.c.b16 %v460, %v458
        %v475 = vpack.c.b16 %v463, %v461
        %v476 = vpack.c.b16 %v464, %v462
        %v477 = vpack.c.b16 %v467, %v465
        %v478 = vpack.c.b16 %v468, %v466
        %v479 = vpack.c.b16 %v471, %v469
        %v480 = vpack.c.b16 %v472, %v470
        %v490 = vsel %vm353, %v427, 0
        %v493 = vsel %vm353, %v428, 0
        %495 = vmatprep.subr.bf16.mxu0 0
        %496 = vmatpush1.bf16.msra.mxu0 0
        %497 = vmatprep.subr.bf16.mxu0 0
        %498 = vmatpush1.bf16.msra.mxu0 0
        %499 = vmatprep.subr.bf16.mxu0 0
        %500 = vmatpush1.bf16.msra.mxu0 0
        %501 = vmatprep.subr.bf16.mxu0 0
        %502 = vmatpush1.bf16.msra.mxu0 0
        %503 = vmatprep.subr.bf16.mxu0 %v480
        %504 = vmatpush1.bf16.msra.mxu0 %v479
        %505 = vmatprep.subr.bf16.mxu0 %v478
        %506 = vmatpush1.bf16.msra.mxu0 %v477
        %507 = vmatprep.subr.bf16.mxu0 %v476
        %508 = vmatpush1.bf16.msra.mxu0 %v475
        %509 = vmatprep.subr.bf16.mxu0 %v474
        %510 = vmatpush1.bf16.msra.mxu0 %v473
        %511 = vmatprep.subr.bf16.mxu0 0
        %512 = vmatpush2.bf16.msra.mxu0 0
        %513 = vmatprep.subr.bf16.mxu0 0
        %514 = vmatpush2.bf16.msra.mxu0 0
        %515 = vmatprep.subr.bf16.mxu0 0
        %516 = vmatpush2.bf16.msra.mxu0 0
        %517 = vmatprep.subr.bf16.mxu0 0
        %518 = vmatpush2.bf16.msra.mxu0 0
        %519 = vmatprep.subr.bf16.mxu0 0
        %520 = vmatpush2.bf16.msra.mxu0 0
        %521 = vmatprep.subr.bf16.mxu0 0
        %522 = vmatpush2.bf16.msra.mxu0 0
        %523 = vmatprep.subr.bf16.mxu0 0
        %524 = vmatpush2.bf16.msra.mxu0 0
        %525 = vmatprep.subr.bf16.mxu0 0
        %526 = vmatpush2.bf16.msra.mxu0 0
        %527 = vmatprep.mubr.bf16.mxu0 0
        %528 = vmatmul.mubr.bf16.gmra.mxu0 %v490
        %v529 = vpop.f32.mrf.mxu0
        %v530 = vadd.f32 %v442, %v529
        %v531 = vpop.f32.mrf.mxu0
        %v532 = vadd.f32 %v446, %v531
        %v533 = vpop.f32.mrf.mxu0
        %v534 = vadd.f32 %v442, %v533
        %v535 = vpop.f32.mrf.mxu0
        %v536 = vadd.f32 %v446, %v535
        %537 = vmatprep.mubr.bf16.mxu0 0
        %538 = vmatmul.mubr.bf16.gmra.mxu0 %v493
        %v539 = vpop.f32.mrf.mxu0
        %v540 = vadd.f32 %v442, %v539
        %v541 = vpop.f32.mrf.mxu0
        %v542 = vadd.f32 %v446, %v541
        %v543 = vpop.f32.mrf.mxu0
        %v544 = vadd.f32 %v442, %v543
        %v545 = vpop.f32.mrf.mxu0
        %v546 = vadd.f32 %v446, %v545
        %547 = vdwg.mxu0
        %v548 = vmul.f32 %v530, 0.25
        %v549 = vmul.f32 %v534, 0.25
        %v550 = vmul.f32 %v540, 0.25
        %v551 = vmul.f32 %v544, 0.25
        %v552 = vpack.c.bf16 %v549, %v548
        %v553 = vpack.c.bf16 %v551, %v550
        %v556 = vunpack.c.l.b16 %v552
        %v557 = vunpack.c.h.b16 %v552
        %v558 = vunpack.c.l.b16 %v553
        %v559 = vunpack.c.h.b16 %v553
        %v560 = vpack.c.b16 %v556, %v556
        %v561 = vpack.c.b16 %v557, %v557
        %v562 = vpack.c.b16 %v558, %v558
        %v563 = vpack.c.b16 %v559, %v559
        %vm568 = vcmask 519168
        %569 = vst.msk [vmem:[%s327] sm:$0xf] %vm568, %v560
        %570 = vst.msk [vmem:[%s327 + $0x4] sm:$0xf] %vm568, %v561
        %571 = vst.msk [vmem:[%s327 + $0x8] sm:$0xf] %vm568, %v562
        %572 = vst.msk [vmem:[%s327 + $0xc] sm:$0xf] %vm568, %v563
        %v573 = vpack.c.bf16 %v534, %v530
        %v574 = vpack.c.bf16 %v544, %v540
        %v577 = vunpack.c.l.b16 %v573
        %v578 = vunpack.c.h.b16 %v573
        %v579 = vunpack.c.l.b16 %v574
        %v580 = vunpack.c.h.b16 %v574
        %v581 = vpack.c.b16 %v577, %v577
        %v582 = vpack.c.b16 %v578, %v578
        %v583 = vpack.c.b16 %v579, %v579
        %v584 = vpack.c.b16 %v580, %v580
        %585 = vrot.lane.b32.xlu0 %v581, 64
        %v586 = vpop.permute.xlu0 %585
        %587 = vrot.lane.b32.xlu0 %v582, 64
        %v588 = vpop.permute.xlu0 %587
        %589 = vrot.lane.b32.xlu0 %v583, 64
        %v590 = vpop.permute.xlu0 %589
        %591 = vrot.lane.b32.xlu0 %v584, 64
        %v592 = vpop.permute.xlu0 %591
        %597 = vst.msk [vmem:[%s334] sm:$0xf] %vm568, %v586
        %598 = vst.msk [vmem:[%s334 + $0x4] sm:$0xf] %vm568, %v588
        %599 = vst.msk [vmem:[%s334 + $0x8] sm:$0xf] %vm568, %v590
        %600 = vst.msk [vmem:[%s334 + $0xc] sm:$0xf] %vm568, %v592
        %v601 = vpack.c.bf16 %v536, %v532
        %v602 = vpack.c.bf16 %v546, %v542
        %v605 = vunpack.c.l.b16 %v601
        %v606 = vunpack.c.h.b16 %v601
        %v607 = vunpack.c.l.b16 %v602
        %v608 = vunpack.c.h.b16 %v602
        %v609 = vpack.c.b16 %v605, %v605
        %v610 = vpack.c.b16 %v606, %v606
        %v611 = vpack.c.b16 %v607, %v607
        %v612 = vpack.c.b16 %v608, %v608
        %617 = vst.msk [vmem:[%s341] sm:$0xf] %vm568, %v609
        %618 = vst.msk [vmem:[%s341 + $0x4] sm:$0xf] %vm568, %v610
        %619 = vst.msk [vmem:[%s341 + $0x8] sm:$0xf] %vm568, %v611
        %620 = vst.msk [vmem:[%s341 + $0xc] sm:$0xf] %vm568, %v612
        %s621 = sand.u32 %s147, 1
        %s622 = scalar_lea.sflag [#allocation4], %s621
        %s623 = sand.u32 %s147, 1
        %s624 = smul.addr %s623, 16
        %s625 = scalar_lea.vmem [#allocation8], %s624
        %s626 = sand.u32 %s29, 1
        %s627 = scalar_lea.sflag [#allocation10], %s626
        %s628 = sand.u32 %s173, 1
        %s629 = smul.addr %s628, 16
        %s630 = scalar_lea.vmem [#allocation9], %s629
        %s631 = sand.u32 %s29, 1
        %s632 = scalar_lea.sflag [#allocation10], %s631
        %s633 = sand.u32 %s199, 1
        %s634 = smul.addr %s633, 16
        %s635 = scalar_lea.vmem [#allocation11], %s634
        // Predicated region
        $region53: #{tpu_custom_call.1} parent=39 // pred_check
          %p636 = pneg %p157
        $region54: #{tpu_custom_call.1} parent=39 // pred_check_branch
          %638 = sbr.rel (%p636) target = $region56
        $region55: #{tpu_custom_call.1} parent=39 // pred_region
          %s639 = smul.u32 4, %s29
          %s641 = ssub.s32 256, 256
          %642 = vsyncadd %s622, %s641
          %s643 = smul.addr %s639, 64
          %s644 = scalar_lea.hbm %s5, %s643
          %s645 = sshll.u32 %s625, 4
          %s646 = int_to_ptr.vmem [resolvable:$true] %s645
          %651 = dma.vmem_to_hbm [thread:$0]  %s646, 256, %s644, %s622, 64, 64, 4
        $region56: #{tpu_custom_call.1} parent=39 // pred_fallthru
          _
        // Predicated region
        $region57: #{tpu_custom_call.1} parent=39 // pred_check
          %p652 = pneg %p183
        $region58: #{tpu_custom_call.1} parent=39 // pred_check_branch
          %654 = sbr.rel (%p652) target = $region60
        $region59: #{tpu_custom_call.1} parent=39 // pred_region
          %s655 = smul.u32 4, %s29
          %s657 = ssub.s32 256, 256
          %658 = vsyncadd %s627, %s657
          %s659 = smul.addr %s655, 64
          %s660 = scalar_lea.hbm %s6, %s659
          %s661 = sshll.u32 %s630, 4
          %s662 = int_to_ptr.vmem [resolvable:$true] %s661
          %667 = dma.vmem_to_hbm [thread:$0]  %s662, 256, %s660, %s627, 64, 64, 4
        $region60: #{tpu_custom_call.1} parent=39 // pred_fallthru
          _
        // Predicated region
        $region61: #{tpu_custom_call.1} parent=39 // pred_check
          %p668 = pneg %p209
        $region62: #{tpu_custom_call.1} parent=39 // pred_check_branch
          %670 = sbr.rel (%p668) target = $region64
        $region63: #{tpu_custom_call.1} parent=39 // pred_region
          %s671 = smul.u32 4, %s29
          %s673 = ssub.s32 256, 256
          %674 = vsyncadd %s632, %s673
          %s675 = smul.addr %s671, 64
          %s676 = scalar_lea.hbm %s7, %s675
          %s677 = sshll.u32 %s635, 4
          %s678 = int_to_ptr.vmem [resolvable:$true] %s677
          %683 = dma.vmem_to_hbm [thread:$0]  %s678, 256, %s676, %s632, 64, 64, 4
        $region64: #{tpu_custom_call.1} parent=39 // pred_fallthru
          _
      $region40: #{tpu_custom_call.1} parent=5 // pred_fallthru
        _
      %p684 = scmp.le.s32.totalorder 2, %s24
      // Predicated region
      $region65: #{tpu_custom_call.1} parent=5 // pred_check
        %p685 = pneg %p684
      $region66: #{tpu_custom_call.1} parent=5 // pred_check_branch
        %687 = sbr.rel (%p685) target = $region68
      $region67: #{tpu_custom_call.1} parent=5 // pred_region
        %s688 = ssub.s32 %s24, 2
        // Predicated region
        $region69: #{tpu_custom_call.1} parent=67 // pred_check
          %p689 = pneg %p163
        $region70: #{tpu_custom_call.1} parent=67 // pred_check_branch
          %691 = sbr.rel (%p689) target = $region72
        $region71: #{tpu_custom_call.1} parent=67 // pred_region
          %s692 = sand.u32 %s148, 1
          %s693 = scalar_lea.sflag [#allocation4], %s692
          %s694 = sand.u32 %s148, 1
          %s695 = smul.addr %s694, 16
          %s696 = scalar_lea.vmem [#allocation8], %s695
          %697 = dma.done %s693, 256
        $region72: #{tpu_custom_call.1} parent=67 // pred_fallthru
          _
        // Predicated region
        $region73: #{tpu_custom_call.1} parent=67 // pred_check
          %p698 = pneg %p189
        $region74: #{tpu_custom_call.1} parent=67 // pred_check_branch
          %700 = sbr.rel (%p698) target = $region76
        $region75: #{tpu_custom_call.1} parent=67 // pred_region
          %s701 = sand.u32 %s30, 1
          %s702 = scalar_lea.sflag [#allocation10], %s701
          %s703 = sand.u32 %s174, 1
          %s704 = smul.addr %s703, 16
          %s705 = scalar_lea.vmem [#allocation9], %s704
          %706 = dma.done %s702, 256
        $region76: #{tpu_custom_call.1} parent=67 // pred_fallthru
          _
        // Predicated region
        $region77: #{tpu_custom_call.1} parent=67 // pred_check
          %p707 = pneg %p215
        $region78: #{tpu_custom_call.1} parent=67 // pred_check_branch
          %709 = sbr.rel (%p707) target = $region80
        $region79: #{tpu_custom_call.1} parent=67 // pred_region
          %s710 = sand.u32 %s30, 1
          %s711 = scalar_lea.sflag [#allocation10], %s710
          %s712 = sand.u32 %s200, 1
          %s713 = smul.addr %s712, 16
          %s714 = scalar_lea.vmem [#allocation11], %s713
          %715 = dma.done %s711, 256
        $region80: #{tpu_custom_call.1} parent=67 // pred_fallthru
          _
      $region68: #{tpu_custom_call.1} parent=5 // pred_fallthru
        _
    $region6: #{tpu_custom_call.1} parent=1 // loop_footer
      %s28 = sadd.s32 1, %s24
    $region7: #{tpu_custom_call.1} parent=1 // loop_footer_branch
      %23 = sbr.rel target = $region3
    $region8: #{tpu_custom_call.1} parent=1 // loop_exit
      _
    %716 = vsyncpa [#allocation3], 1
    %s717 = scalar_lea.sflag [#allocation3], 1
    %718 = vsyncpa %s717, 1
    %719 = vsyncpa [#allocation6], 1
    %720 = vsyncpa [#allocation4], 1
    %s721 = scalar_lea.sflag [#allocation4], 1
    %722 = vsyncpa %s721, 1
    %723 = vsyncpa [#allocation10], 1
    %s724 = scalar_lea.sflag [#allocation10], 1
    %725 = vsyncpa %s724, 1

</llo_original>
